<compile_context>
chip_gen: v6e
topology: v6e:2x2x1
jax: 0.10.0
libtpu: 0.0.40
codegen_flags: <defaults>
</compile_context>

<pallas_src>
import jax
import jax.numpy as jnp
from jax.experimental import pallas as pl
from jax.experimental.pallas import tpu as pltpu


def tabular_encoder_kernel(x_ref, w_ref, b_ref, o_ref):
    # x_ref: (TB, L)   w_ref: (1, Hp)   b_ref: (1, Hp)   o_ref: (TB, Hp)
    # Hoisted reduction: mean over L first, then broadcast multiply-add.
    inv_l = 1.0 / x_ref.shape[1]                               # static constant
    xbar = jnp.sum(x_ref[...], axis=1, keepdims=True) * inv_l  # (TB, 1)
    o_ref[...] = xbar * w_ref[...] + b_ref[...]                # (TB, Hp) on the VPU


def tabular_encoder(text, weight, bias, *, tb_max=512):
    """text: (B, L, 1) f32; weight: (H, 1) f32; bias: (H,) f32 -> (B, 1, H)."""
    B, L, _ = text.shape
    H = weight.shape[0]

    x2d = text[..., 0].astype(jnp.float32)                    # (B, L)

    # Lane-dense output: pad H up to a multiple of 128.
    Hp = ((H + 127) // 128) * 128
    # Batch tile: multiple of 8 sublanes, capped so 2x double-buffered
    # (TB, L) + (TB, Hp) tiles stay well under the default scoped VMEM
    # (32 MiB on v6e/v7x, 16 MiB on v5e).
    TB = min(tb_max, ((B + 7) // 8) * 8)
    Bp = ((B + TB - 1) // TB) * TB

    if Bp != B:
        x2d = jnp.pad(x2d, ((0, Bp - B), (0, 0)))
    w2d = jnp.pad(weight.reshape(1, H).astype(jnp.float32), ((0, 0), (0, Hp - H)))
    b2d = jnp.pad(bias.reshape(1, H).astype(jnp.float32), ((0, 0), (0, Hp - H)))

    out = pl.pallas_call(
        tabular_encoder_kernel,
        out_shape=jax.ShapeDtypeStruct((Bp, Hp), jnp.float32),
        grid=(Bp // TB,),
        in_specs=[
            pl.BlockSpec((TB, L), lambda i: (i, 0)),           # batch-tiled input
            pl.BlockSpec((1, Hp), lambda i: (0, 0)),           # weight stays resident
            pl.BlockSpec((1, Hp), lambda i: (0, 0)),           # bias stays resident
        ],
        out_specs=pl.BlockSpec((TB, Hp), lambda i: (i, 0)),    # lane-dense output tile
        compiler_params=pltpu.CompilerParams(
            dimension_semantics=("parallel",)),
    )(x2d, w2d, b2d)

    return out[:B, :H].reshape(B, 1, H)


if __name__ == "__main__":
    # Small shapes consistent with the module: batch=2, context_length=8, hid_width=32
    B, L, H = 2, 8, 32
    key = jax.random.PRNGKey(0)
    k_x, k_w, k_b = jax.random.split(key, 3)

    text = jax.random.normal(k_x, (B, L, 1), dtype=jnp.float32)
    # Deterministic synthetic parameters for nn.Linear(1, H): weight (H, 1), bias (H,)
    weight = jax.random.normal(k_w, (H, 1), dtype=jnp.float32) * 0.02
    bias = jax.random.normal(k_b, (H,), dtype=jnp.float32) * 0.02

    out = tabular_encoder(text, weight, bias)
    out = jax.block_until_ready(out)

    # Pure-JAX reference (same semantics: linear over last dim, then mean over dim=1)
    ref = jnp.mean(text @ weight.T + bias, axis=1, keepdims=True)
    assert out.shape == (B, 1, H)
    assert jnp.allclose(out, ref, atol=1e-5, rtol=1e-5)

    print("KERNEL_OK")
</pallas_src>

<mosaic_0001>
module attributes {stable_mosaic.version = 11 : i64} {
  func.func @tabular_encoder_kernel(%arg0: i32, %arg1: memref<8x8xf32, #tpu.memory_space<vmem>>, %arg2: memref<1x128xf32, #tpu.memory_space<vmem>>, %arg3: memref<1x128xf32, #tpu.memory_space<vmem>>, %arg4: memref<8x128xf32, #tpu.memory_space<vmem>>) attributes {dimension_semantics = [#tpu.dimension_semantics<parallel>], iteration_bounds = array<i64: 1>, scalar_prefetch = 0 : i64, scratch_operands = 0 : i64, tpu.core_type = #tpu.core_type<tc>, window_params = [{transform_indices = @transform_0, window_bounds = array<i64: 8, 8>}, {pipeline_mode = #tpu.pipeline_mode<synchronous>, transform_indices = @transform_1, window_bounds = array<i64: 1, 128>}, {pipeline_mode = #tpu.pipeline_mode<synchronous>, transform_indices = @transform_2, window_bounds = array<i64: 1, 128>}, {transform_indices = @transform_3, window_bounds = array<i64: 8, 128>}]} {
    %c0 = arith.constant 0 : index
    %c0_0 = arith.constant 0 : index
    %0 = vector.load %arg1[%c0, %c0_0] : memref<8x8xf32, #tpu.memory_space<vmem>>, vector<8x8xf32>
    %cst = arith.constant dense<0.000000e+00> : vector<8xf32>
    %1 = vector.multi_reduction <add>, %0, %cst [1] : vector<8x8xf32> to vector<8xf32>
    %2 = vector.shape_cast %1 : vector<8xf32> to vector<8x1xf32>
    %cst_1 = arith.constant 1.250000e-01 : f32
    %3 = vector.broadcast %cst_1 : f32 to vector<8x1xf32>
    %4 = arith.mulf %2, %3 : vector<8x1xf32>
    %c0_2 = arith.constant 0 : index
    %c0_3 = arith.constant 0 : index
    %5 = vector.load %arg2[%c0_2, %c0_3] : memref<1x128xf32, #tpu.memory_space<vmem>>, vector<1x128xf32>
    %6 = vector.broadcast %4 : vector<8x1xf32> to vector<8x128xf32>
    %7 = vector.broadcast %5 : vector<1x128xf32> to vector<8x128xf32>
    %8 = arith.mulf %6, %7 : vector<8x128xf32>
    %c0_4 = arith.constant 0 : index
    %c0_5 = arith.constant 0 : index
    %9 = vector.load %arg3[%c0_4, %c0_5] : memref<1x128xf32, #tpu.memory_space<vmem>>, vector<1x128xf32>
    %10 = vector.broadcast %9 : vector<1x128xf32> to vector<8x128xf32>
    %11 = arith.addf %8, %10 : vector<8x128xf32>
    %c0_6 = arith.constant 0 : index
    %c0_7 = arith.constant 0 : index
    %12 = vector.load %arg4[%c0_6, %c0_7] : memref<8x128xf32, #tpu.memory_space<vmem>>, vector<8x128xf32>
    tpu.vector_store %arg4[%c0_6, %c0_7], %11 {strides = array<i32>} : memref<8x128xf32, #tpu.memory_space<vmem>>, vector<8x128xf32>,
    return
  }
  func.func @transform_0(%arg0: i32) -> (i32, i32) {
    %c0_i32 = arith.constant 0 : i32
    %c0_i32_0 = arith.constant 0 : i32
    return %arg0, %c0_i32 : i32, i32
  }
  func.func @transform_1(%arg0: i32) -> (i32, i32) {
    %c0_i32 = arith.constant 0 : i32
    %c0_i32_0 = arith.constant 0 : i32
    %c0_i32_1 = arith.constant 0 : i32
    return %c0_i32, %c0_i32_0 : i32, i32
  }
  func.func @transform_2(%arg0: i32) -> (i32, i32) {
    %c0_i32 = arith.constant 0 : i32
    %c0_i32_0 = arith.constant 0 : i32
    %c0_i32_1 = arith.constant 0 : i32
    return %c0_i32, %c0_i32_0 : i32, i32
  }
  func.func @transform_3(%arg0: i32) -> (i32, i32) {
    %c0_i32 = arith.constant 0 : i32
    %c0_i32_0 = arith.constant 0 : i32
    return %arg0, %c0_i32 : i32, i32
  }
}

</mosaic_0001>

<llo_original>
// kernel: tpu_custom_call.1
$region0: #{tpu_custom_call.1}
  #allocation0 [shape = 'u32[]', space=smem, size = 0x4, offset = 0x4, fixed_abs, tag = 'smem constant byte address 0x4 - core index']
  #allocation1 [shape = 'u32[144,128]{1,0:T(1,128)}', space=vmem, size = 0x12000, scoped, tag = 'internal scratch']
  %s0 = inlined_call_operand.hbm [shape: f32[8,8], index: 0, kind: input, shape index: {}]
  %s1 = inlined_call_operand.vmem [shape: f32[1,128], index: 1, kind: input, shape index: {}]
  %s2 = inlined_call_operand.vmem [shape: f32[1,128], index: 2, kind: input, shape index: {}]
  %s3 = inlined_call_operand.hbm [shape: f32[8,128], index: 3, kind: output, shape index: {}]
  %s4 = sld [smem:[#allocation0]]
  $region26: #{tpu_custom_call.1} parent=0
    _
  %s6 = ssub.s32 1, %s4
  %s7 = scalar_select 0, %s6, %s4
  $region1: #{tpu_custom_call.1} parent=0
    #allocation2 [shape = 'u8[4096]{0}', space=vmem, size = 0x1000, scoped, tag = 'input window, operand 0, single buffered']
    #allocation3 [shape = 's32[1]{0}', space=sflag, size = 0x4, scoped, tag = 'scoped memory for tpu_custom_call.1']
    #allocation4 [shape = 's32[1]{0}', space=sflag, size = 0x4, scoped, tag = 'scoped memory for tpu_custom_call.1']
    #allocation5 [shape = 'u8[4096]{0}', space=vmem, size = 0x1000, scoped, tag = 'output window, operand 0, single buffered']
    %8 = vsyncpa [#allocation3], 0
    %9 = vsyncpa [#allocation4], 0
    // Predicated region
    $region2: #{tpu_custom_call.1} parent=1 // pred_check
      _
    $region3: #{tpu_custom_call.1} parent=1 // pred_check_branch
      %11 = sbr.rel (0) target = $region5
    $region4: #{tpu_custom_call.1} parent=1 // pred_region
      %s13 = ssub.s32 128, 128
      %14 = vsyncadd [#allocation3], %s13
      %s16 = sshll.u32 [#allocation2], 4
      %s17 = int_to_ptr.vmem [resolvable:$true] %s16
      %19 = dma.hbm_to_vmem [thread:$0]  %s0, 128, %s17, [#allocation3]
    $region5: #{tpu_custom_call.1} parent=1 // pred_fallthru
      _
    // Predicated region
    $region6: #{tpu_custom_call.1} parent=1 // pred_check
      _
    $region7: #{tpu_custom_call.1} parent=1 // pred_check_branch
      %21 = sbr.rel (0) target = $region9
    $region8: #{tpu_custom_call.1} parent=1 // pred_region
      _
    $region9: #{tpu_custom_call.1} parent=1 // pred_fallthru
      _
    // Predicated region
    $region10: #{tpu_custom_call.1} parent=1 // pred_check
      _
    $region11: #{tpu_custom_call.1} parent=1 // pred_check_branch
      %23 = sbr.rel (0) target = $region13
    $region12: #{tpu_custom_call.1} parent=1 // pred_region
      _
    $region13: #{tpu_custom_call.1} parent=1 // pred_fallthru
      _
    // Predicated region
    $region14: #{tpu_custom_call.1} parent=1 // pred_check
      _
    $region15: #{tpu_custom_call.1} parent=1 // pred_check_branch
      %25 = sbr.rel (0) target = $region17
    $region16: #{tpu_custom_call.1} parent=1 // pred_region
      %26 = dma.done [#allocation3], 128
    $region17: #{tpu_custom_call.1} parent=1 // pred_fallthru
      _
    %v27 = vld [vmem:[#allocation2] sm:$0xff]
    %vm28 = vcmask 64512
    %v29 = vsel %vm28, %v27, 0.0
    %30 = vadd.xlane.f32.xlu0 %v29
    %v31 = vpop.xlane.xlu0 %30
    %v32 = vmul.f32 %v31, 0.125
    %v33 = vld [vmem:[%s1] sm:$0x1]
    %v35 = vlaneseq
    %v36 = vshrl.u32 %v35, 7
    %v37 = vsub.s32 0, %v36
    %v38 = vrot.slane %v33, %v37
    %v40 = vmul.f32 %v32, %v38
    %v41 = vld [vmem:[%s2] sm:$0x1]
    %v43 = vlaneseq
    %v44 = vshrl.u32 %v43, 7
    %v45 = vsub.s32 0, %v44
    %v46 = vrot.slane %v41, %v45
    %v48 = vadd.f32 %v40, %v46
    %49 = vst [vmem:[#allocation5] sm:$0xff] %v48
    // Predicated region
    $region18: #{tpu_custom_call.1} parent=1 // pred_check
      _
    $region19: #{tpu_custom_call.1} parent=1 // pred_check_branch
      %51 = sbr.rel (0) target = $region21
    $region20: #{tpu_custom_call.1} parent=1 // pred_region
      %s53 = ssub.s32 128, 128
      %54 = vsyncadd [#allocation4], %s53
      %s56 = sshll.u32 [#allocation5], 4
      %s57 = int_to_ptr.vmem [resolvable:$true] %s56
      %59 = dma.vmem_to_hbm [thread:$0]  %s57, 128, %s3, [#allocation4]
    $region21: #{tpu_custom_call.1} parent=1 // pred_fallthru
      _
    // Predicated region
    $region22: #{tpu_custom_call.1} parent=1 // pred_check
      _
    $region23: #{tpu_custom_call.1} parent=1 // pred_check_branch
      %61 = sbr.rel (0) target = $region25
    $region24: #{tpu_custom_call.1} parent=1 // pred_region
      %62 = dma.done [#allocation4], 128
    $region25: #{tpu_custom_call.1} parent=1 // pred_fallthru
      _
    %63 = vsyncpa [#allocation3], 1
    %64 = vsyncpa [#allocation4], 1

</llo_original>
